<compile_context>
chip_gen: v6e
topology: v6e:2x2x1
jax: 0.10.0
libtpu: 0.0.40
codegen_flags: <defaults>
</compile_context>

<pallas_src>
import jax
import jax.numpy as jnp
from jax.experimental import pallas as pl
from jax.experimental.pallas import tpu as pltpu

NEG_SLOPE = 0.01                  # F.leaky_relu default negative_slope
NEG_SLOPE2 = NEG_SLOPE * NEG_SLOPE
LANE = 128
SUBLANE = 8
PAD_BIAS = -1e30                  # finite "-inf" for padded tag columns


def _round_up(x, m):
    return ((x + m - 1) // m) * m


def _ner_head_kernel(x_ref, w_ref, b_ref, scores_ref, logp_ref):
    x = x_ref[...]
    # dropout(leaky_relu(dropout(leaky_relu(x)))) with eval-mode dropout
    # == leaky_relu applied twice == one select with slope NEG_SLOPE**2.
    h = jnp.where(x > 0, x, NEG_SLOPE2 * x)
    # (tile_n, H) @ (H, Tp) on the MXU, f32 accumulate, + bias row.
    scores = jnp.dot(h, w_ref[...], preferred_element_type=jnp.float32) + b_ref[...]
    # numerically stable log_softmax over the (lane-dense, padded) tag dim;
    # padded columns carry bias=-1e30 so they contribute ~0 probability mass.
    m = jnp.max(scores, axis=-1, keepdims=True)
    lse = jnp.log(jnp.sum(jnp.exp(scores - m), axis=-1, keepdims=True)) + m
    scores_ref[...] = scores
    logp_ref[...] = scores - lse


def ner_head(embedded, w, b, *, tile_n=512):
    """embedded: (B, S, H) f32; w: (H, T) f32; b: (T,) f32.
    Returns (token_scores, token_log_scores), each (B, S, T) f32."""
    B, S, H = embedded.shape
    T = w.shape[1]
    N = B * S

    # Lane-dense tag dim: pad T up to a multiple of 128. Zero weight columns
    # + a very negative bias keep softmax mass and argmax on the real tags.
    Tp = _round_up(T, LANE)
    w_p = jnp.zeros((H, Tp), jnp.float32).at[:, :T].set(w.astype(jnp.float32))
    b_p = jnp.full((1, Tp), PAD_BIAS, jnp.float32).at[0, :T].set(b.astype(jnp.float32))

    # Row tiling: large tiles amortize per-grid-step overhead; shrink for tiny
    # inputs so we don't pad a 16-row problem out to 512 rows.
    tile = min(_round_up(tile_n, SUBLANE), _round_up(N, SUBLANE))
    Np = _round_up(N, tile)
    x = embedded.reshape(N, H).astype(jnp.float32)
    if Np != N:
        x = jnp.pad(x, ((0, Np - N), (0, 0)))  # padded rows sliced off below

    grid = (Np // tile,)

    # VMEM budget: double-buffered x tile + two double-buffered lane-dense
    # output tiles + resident weight/bias, with headroom; capped well under
    # v7x's 64 MiB physical per-core VMEM.
    vmem_bytes = (2 * tile * H * 4) + (2 * 2 * tile * Tp * 4) + 2 * (H * Tp + Tp) * 4
    vmem_limit = int(min(max(2 * vmem_bytes + (4 << 20), 16 << 20), 48 << 20))

    scores_p, logp_p = pl.pallas_call(
        _ner_head_kernel,
        out_shape=(
            jax.ShapeDtypeStruct((Np, Tp), jnp.float32),
            jax.ShapeDtypeStruct((Np, Tp), jnp.float32),
        ),
        grid_spec=pltpu.PrefetchScalarGridSpec(
            num_scalar_prefetch=0,
            grid=grid,
            in_specs=[
                pl.BlockSpec((tile, H), lambda i: (i, 0)),
                # grid-invariant block index -> weight/bias stay resident,
                # no per-step re-DMA.
                pl.BlockSpec((H, Tp), lambda i: (0, 0)),
                pl.BlockSpec((1, Tp), lambda i: (0, 0)),
            ],
            out_specs=[
                pl.BlockSpec((tile, Tp), lambda i: (i, 0)),
                pl.BlockSpec((tile, Tp), lambda i: (i, 0)),
            ],
        ),
        compiler_params=pltpu.CompilerParams(
            dimension_semantics=("parallel",),
            vmem_limit_bytes=vmem_limit,
        ),
    )(x, w_p, b_p)

    token_scores = scores_p[:N, :T].reshape(B, S, T)
    token_log_scores = logp_p[:N, :T].reshape(B, S, T)
    return token_scores, token_log_scores


def ner_forward(embedded, w, b, tags, mask):
    """Plain-JAX glue around the kernel reproducing the non-CRF decode path
    (use_crf=False, use_cls='crossentropy', use_wof=False)."""
    token_scores, token_log_scores = ner_head(embedded, w, b)
    B, S, T = token_log_scores.shape
    # NLLLoss(weight=1.0, reduction='none') on flattened logits, summed / batch
    # (matches the PyTorch branch, which does not mask the flat loss either).
    flat_logp = token_log_scores.reshape(-1, T)
    flat_tags = tags.reshape(-1)
    flat_loss = -jnp.take_along_axis(flat_logp, flat_tags[:, None], axis=-1)[:, 0]
    loss = jnp.sum(flat_loss) / float(B)
    # best_path = argmax over tag dim (non-CRF branch)
    best_path = jnp.argmax(token_log_scores, axis=-1)
    # TODO(synk): CRF forward loss + viterbi decode (default use_crf=True),
    # span extraction / SpanF1 / tokenizer post-processing are host-side Python
    # with no Pallas equivalent; the pretrained XLM-R encoder is out of scope.
    return {"loss": loss,
            "token_scores": token_scores,
            "token_log_scores": token_log_scores,
            "best_path": best_path}


if __name__ == "__main__":
    # Small shapes consistent with the module: batch=2, seq=8, hidden=32, 9 BIO tags.
    B, S, H, T = 2, 8, 32, 9
    key = jax.random.PRNGKey(0)
    k1, k2, k3, k4 = jax.random.split(key, 4)

    # Simulated encoder.last_hidden_state (pretrained encoder out of scope).
    embedded = jax.random.normal(k1, (B, S, H), dtype=jnp.float32)
    # nn.Linear(H, T) parameters, weight stored transposed as (H, T).
    w = (jax.random.normal(k2, (H, T), dtype=jnp.float32) / jnp.sqrt(H)).astype(jnp.float32)
    bias = jax.random.normal(k3, (T,), dtype=jnp.float32) * 0.01
    tags = jax.random.randint(k4, (B, S), 0, T, dtype=jnp.int32)
    mask = jnp.ones((B, S), dtype=jnp.int32)

    out = ner_forward(embedded, w, bias, tags, mask)
    jax.block_until_ready(out)

    # Reference check in plain JAX (faithful two-pass leaky_relu).
    def ref(x, w, b):
        h = jnp.where(x > 0, x, NEG_SLOPE * x)
        h = jnp.where(h > 0, h, NEG_SLOPE * h)
        s = jnp.einsum("bsh,ht->bst", h, w) + b
        return s, jax.nn.log_softmax(s, axis=-1)

    ref_scores, ref_logp = ref(embedded, w, bias)
    assert jnp.allclose(out["token_scores"], ref_scores, atol=1e-4, rtol=1e-4)
    assert jnp.allclose(out["token_log_scores"], ref_logp, atol=1e-4, rtol=1e-4)
    assert out["best_path"].shape == (B, S)
    assert jnp.isfinite(out["loss"])

    print("KERNEL_OK")
</pallas_src>

<mosaic_0001>
module attributes {stable_mosaic.version = 11 : i64} {
  func.func @_ner_head_kernel(%arg0: i32, %arg1: memref<16x32xf32, #tpu.memory_space<vmem>>, %arg2: memref<32x128xf32, #tpu.memory_space<vmem>>, %arg3: memref<1x128xf32, #tpu.memory_space<vmem>>, %arg4: memref<16x128xf32, #tpu.memory_space<vmem>>, %arg5: memref<16x128xf32, #tpu.memory_space<vmem>>) attributes {dimension_semantics = [#tpu.dimension_semantics<parallel>], iteration_bounds = array<i64: 1>, scalar_prefetch = 0 : i64, scratch_operands = 0 : i64, tpu.core_type = #tpu.core_type<tc>, window_params = [{transform_indices = @transform_0, window_bounds = array<i64: 16, 32>}, {pipeline_mode = #tpu.pipeline_mode<synchronous>, transform_indices = @transform_1, window_bounds = array<i64: 32, 128>}, {pipeline_mode = #tpu.pipeline_mode<synchronous>, transform_indices = @transform_2, window_bounds = array<i64: 1, 128>}, {transform_indices = @transform_3, window_bounds = array<i64: 16, 128>}, {transform_indices = @transform_4, window_bounds = array<i64: 16, 128>}]} {
    %c0 = arith.constant 0 : index
    %c0_0 = arith.constant 0 : index
    %0 = vector.load %arg1[%c0, %c0_0] : memref<16x32xf32, #tpu.memory_space<vmem>>, vector<16x32xf32>
    %cst = arith.constant 0.000000e+00 : f32
    %1 = vector.broadcast %cst : f32 to vector<16x32xf32>
    %2 = arith.cmpf ogt, %0, %1 : vector<16x32xf32>
    %cst_1 = arith.constant 9.99999974E-5 : f32
    %3 = vector.broadcast %cst_1 : f32 to vector<16x32xf32>
    %4 = arith.mulf %3, %0 : vector<16x32xf32>
    %5 = arith.select %2, %0, %4 : vector<16x32xi1>, vector<16x32xf32>
    %c0_2 = arith.constant 0 : index
    %c0_3 = arith.constant 0 : index
    %6 = vector.load %arg2[%c0_2, %c0_3] : memref<32x128xf32, #tpu.memory_space<vmem>>, vector<32x128xf32>
    %cst_4 = arith.constant dense<0.000000e+00> : vector<16x128xf32>
    %7 = tpu.matmul %5, %6, %cst_4 {dimension_numbers = #tpu.dot_dimension_numbers<[1], [0], [0], [1], [0, 0, 1, 1], [], []>} : vector<16x32xf32>, vector<32x128xf32>, vector<16x128xf32> -> vector<16x128xf32>
    %c0_5 = arith.constant 0 : index
    %c0_6 = arith.constant 0 : index
    %8 = vector.load %arg3[%c0_5, %c0_6] : memref<1x128xf32, #tpu.memory_space<vmem>>, vector<1x128xf32>
    %9 = vector.broadcast %8 : vector<1x128xf32> to vector<16x128xf32>
    %10 = arith.addf %7, %9 : vector<16x128xf32>
    %cst_7 = arith.constant dense<0xFF800000> : vector<16xf32>
    %11 = vector.multi_reduction <maximumf>, %10, %cst_7 [1] : vector<16x128xf32> to vector<16xf32>
    %12 = vector.shape_cast %11 : vector<16xf32> to vector<16x1xf32>
    %13 = vector.broadcast %12 : vector<16x1xf32> to vector<16x128xf32>
    %14 = arith.subf %10, %13 : vector<16x128xf32>
    %15 = math.exp %14 : vector<16x128xf32>
    %cst_8 = arith.constant dense<0.000000e+00> : vector<16xf32>
    %16 = vector.multi_reduction <add>, %15, %cst_8 [1] : vector<16x128xf32> to vector<16xf32>
    %17 = vector.shape_cast %16 : vector<16xf32> to vector<16x1xf32>
    %18 = math.log %17 : vector<16x1xf32>
    %19 = arith.addf %18, %12 : vector<16x1xf32>
    %c0_9 = arith.constant 0 : index
    %c0_10 = arith.constant 0 : index
    %20 = vector.load %arg4[%c0_9, %c0_10] : memref<16x128xf32, #tpu.memory_space<vmem>>, vector<16x128xf32>
    tpu.vector_store %arg4[%c0_9, %c0_10], %10 {strides = array<i32>} : memref<16x128xf32, #tpu.memory_space<vmem>>, vector<16x128xf32>,
    %21 = vector.broadcast %19 : vector<16x1xf32> to vector<16x128xf32>
    %22 = arith.subf %10, %21 : vector<16x128xf32>
    %c0_11 = arith.constant 0 : index
    %c0_12 = arith.constant 0 : index
    %23 = vector.load %arg5[%c0_11, %c0_12] : memref<16x128xf32, #tpu.memory_space<vmem>>, vector<16x128xf32>
    tpu.vector_store %arg5[%c0_11, %c0_12], %22 {strides = array<i32>} : memref<16x128xf32, #tpu.memory_space<vmem>>, vector<16x128xf32>,
    return
  }
  func.func @transform_0(%arg0: i32) -> (i32, i32) {
    %c0_i32 = arith.constant 0 : i32
    %c0_i32_0 = arith.constant 0 : i32
    return %arg0, %c0_i32 : i32, i32
  }
  func.func @transform_1(%arg0: i32) -> (i32, i32) {
    %c0_i32 = arith.constant 0 : i32
    %c0_i32_0 = arith.constant 0 : i32
    %c0_i32_1 = arith.constant 0 : i32
    return %c0_i32, %c0_i32_0 : i32, i32
  }
  func.func @transform_2(%arg0: i32) -> (i32, i32) {
    %c0_i32 = arith.constant 0 : i32
    %c0_i32_0 = arith.constant 0 : i32
    %c0_i32_1 = arith.constant 0 : i32
    return %c0_i32, %c0_i32_0 : i32, i32
  }
  func.func @transform_3(%arg0: i32) -> (i32, i32) {
    %c0_i32 = arith.constant 0 : i32
    %c0_i32_0 = arith.constant 0 : i32
    return %arg0, %c0_i32 : i32, i32
  }
  func.func @transform_4(%arg0: i32) -> (i32, i32) {
    %c0_i32 = arith.constant 0 : i32
    %c0_i32_0 = arith.constant 0 : i32
    return %arg0, %c0_i32 : i32, i32
  }
}

</mosaic_0001>

<llo_original>
// kernel: tpu_custom_call.1
$region0: #{tpu_custom_call.1}
  #allocation0 [shape = 'u32[]', space=smem, size = 0x4, offset = 0x4, fixed_abs, tag = 'smem constant byte address 0x4 - core index']
  #allocation1 [shape = 'u32[144,128]{1,0:T(1,128)}', space=vmem, size = 0x12000, scoped, tag = 'internal scratch']
  %s0 = inlined_call_operand.hbm [shape: f32[16,32], index: 0, kind: input, shape index: {}]
  %s1 = inlined_call_operand.hbm [shape: f32[32,128], index: 1, kind: input, shape index: {}]
  %s2 = inlined_call_operand.vmem [shape: f32[1,128], index: 2, kind: input, shape index: {}]
  %s3 = inlined_call_operand.hbm [shape: f32[16,128], index: 3, kind: output, shape index: {0}]
  %s4 = inlined_call_operand.hbm [shape: f32[16,128], index: 4, kind: output, shape index: {1}]
  %5 = xla_tuple %s3, %s4
  %s6 = sld [smem:[#allocation0]]
  $region38: #{tpu_custom_call.1} parent=0
    _
  %s8 = ssub.s32 1, %s6
  %s9 = scalar_select 0, %s8, %s6
  $region1: #{tpu_custom_call.1} parent=0
    #allocation2 [shape = 'u8[8192]{0}', space=vmem, size = 0x2000, scoped, tag = 'input window, operand 0, single buffered']
    #allocation3 [shape = 's32[1]{0}', space=sflag, size = 0x4, scoped, tag = 'scoped memory for tpu_custom_call.1']
    #allocation4 [shape = 's32[1]{0}', space=sflag, size = 0x4, scoped, tag = 'scoped memory for tpu_custom_call.1']
    #allocation5 [shape = 'u8[16384]{0}', space=vmem, size = 0x4000, scoped, tag = 'input window, operand 1, single buffered']
    #allocation6 [shape = 's32[1]{0}', space=sflag, size = 0x4, scoped, tag = 'scoped memory for tpu_custom_call.1']
    #allocation7 [shape = 'u8[8192]{0}', space=vmem, size = 0x2000, scoped, tag = 'output window, operand 0, single buffered']
    #allocation8 [shape = 'u8[8192]{0}', space=vmem, size = 0x2000, scoped, tag = 'output window, operand 1, single buffered']
    #allocation9 [shape = 's32[1]{0}', space=sflag, size = 0x4, scoped, tag = 'scoped memory for tpu_custom_call.1']
    %10 = vsyncpa [#allocation3], 0
    %11 = vsyncpa [#allocation6], 0
    %12 = vsyncpa [#allocation4], 0
    %13 = vsyncpa [#allocation9], 0
    // Predicated region
    $region2: #{tpu_custom_call.1} parent=1 // pred_check
      _
    $region3: #{tpu_custom_call.1} parent=1 // pred_check_branch
      %15 = sbr.rel (0) target = $region5
    $region4: #{tpu_custom_call.1} parent=1 // pred_region
      %s17 = ssub.s32 256, 256
      %18 = vsyncadd [#allocation3], %s17
      %s19 = sshll.u32 [#allocation2], 4
      %s20 = int_to_ptr.vmem [resolvable:$true] %s19
      %25 = dma.hbm_to_vmem [thread:$0]  %s0, 256, %s20, [#allocation3], 128, 128, 8
    $region5: #{tpu_custom_call.1} parent=1 // pred_fallthru
      _
    // Predicated region
    $region6: #{tpu_custom_call.1} parent=1 // pred_check
      _
    $region7: #{tpu_custom_call.1} parent=1 // pred_check_branch
      %27 = sbr.rel (0) target = $region9
    $region8: #{tpu_custom_call.1} parent=1 // pred_region
      %s29 = ssub.s32 512, 512
      %30 = vsyncadd [#allocation6], %s29
      %s31 = sshll.u32 [#allocation5], 4
      %s32 = int_to_ptr.vmem [resolvable:$true] %s31
      %37 = dma.hbm_to_vmem [thread:$0]  %s1, 512, %s32, [#allocation6], 128, 128, 8
    $region9: #{tpu_custom_call.1} parent=1 // pred_fallthru
      _
    // Predicated region
    $region10: #{tpu_custom_call.1} parent=1 // pred_check
      _
    $region11: #{tpu_custom_call.1} parent=1 // pred_check_branch
      %39 = sbr.rel (0) target = $region13
    $region12: #{tpu_custom_call.1} parent=1 // pred_region
      _
    $region13: #{tpu_custom_call.1} parent=1 // pred_fallthru
      _
    // Predicated region
    $region14: #{tpu_custom_call.1} parent=1 // pred_check
      _
    $region15: #{tpu_custom_call.1} parent=1 // pred_check_branch
      %41 = sbr.rel (0) target = $region17
    $region16: #{tpu_custom_call.1} parent=1 // pred_region
      %42 = dma.done [#allocation3], 256
    $region17: #{tpu_custom_call.1} parent=1 // pred_fallthru
      _
    // Predicated region
    $region18: #{tpu_custom_call.1} parent=1 // pred_check
      _
    $region19: #{tpu_custom_call.1} parent=1 // pred_check_branch
      %44 = sbr.rel (0) target = $region21
    $region20: #{tpu_custom_call.1} parent=1 // pred_region
      %45 = dma.done [#allocation6], 512
    $region21: #{tpu_custom_call.1} parent=1 // pred_fallthru
      _
    %v46 = vld [vmem:[#allocation2] sm:$0xff]
    %v47 = vld [vmem:[#allocation2 + $0x8] sm:$0xff]
    %vm48 = vcmp.gt.f32.partialorder %v46, 0.0
    %vm49 = vcmp.gt.f32.partialorder %v47, 0.0
    %v50 = vmul.f32 %v46, 0.0001
    %v51 = vmul.f32 %v47, 0.0001
    %v52 = vsel %vm48, %v46, %v50
    %v53 = vsel %vm49, %v47, %v51
    %v54 = vld [vmem:[#allocation5] sm:$0xff]
    %v55 = vld [vmem:[#allocation5 + $0x8] sm:$0xff]
    %v56 = vld [vmem:[#allocation5 + $0x10] sm:$0xff]
    %v57 = vld [vmem:[#allocation5 + $0x18] sm:$0xff]
    %v58 = vld [vmem:[%s2] sm:$0x1]
    %v60 = vlaneseq
    %v61 = vshrl.u32 %v60, 7
    %v62 = vsub.s32 0, %v61
    %v63 = vrot.slane %v58, %v62
    %vm65 = vcmask 261120
    %v67 = vsel %vm65, %v52, 0
    %v70 = vsel %vm65, %v53, 0
    %72 = vmatprep.subr.mxu0 0.0
    %73 = vmatpush1.msra.mxu0 0.0
    %74 = vmatprep.subr.mxu0 0.0
    %75 = vmatpush1.msra.mxu0 0.0
    %76 = vmatprep.subr.mxu0 0.0
    %77 = vmatpush1.msra.mxu0 0.0
    %78 = vmatprep.subr.mxu0 0.0
    %79 = vmatpush1.msra.mxu0 0.0
    %80 = vmatprep.subr.mxu0 0.0
    %81 = vmatpush1.msra.mxu0 0.0
    %82 = vmatprep.subr.mxu0 0.0
    %83 = vmatpush1.msra.mxu0 0.0
    %84 = vmatprep.subr.mxu0 0.0
    %85 = vmatpush1.msra.mxu0 0.0
    %86 = vmatprep.subr.mxu0 0.0
    %87 = vmatpush1.msra.mxu0 0.0
    %88 = vmatprep.subr.mxu0 0.0
    %89 = vmatpush1.msra.mxu0 0.0
    %90 = vmatprep.subr.mxu0 0.0
    %91 = vmatpush1.msra.mxu0 0.0
    %92 = vmatprep.subr.mxu0 0.0
    %93 = vmatpush1.msra.mxu0 0.0
    %94 = vmatprep.subr.mxu0 0.0
    %95 = vmatpush1.msra.mxu0 0.0
    %96 = vmatprep.subr.mxu0 0.0
    %97 = vmatpush1.msra.mxu0 %v57
    %98 = vmatprep.subr.mxu0 0.0
    %99 = vmatpush1.msra.mxu0 %v56
    %100 = vmatprep.subr.mxu0 0.0
    %101 = vmatpush1.msra.mxu0 %v55
    %102 = vmatprep.subr.mxu0 0.0
    %103 = vmatpush1.msra.mxu0 %v54
    %104 = vmatprep.subr.mxu0 0.0
    %105 = vmatpush2.msra.mxu0 0.0
    %106 = vmatprep.subr.mxu0 0.0
    %107 = vmatpush2.msra.mxu0 0.0
    %108 = vmatprep.subr.mxu0 0.0
    %109 = vmatpush2.msra.mxu0 0.0
    %110 = vmatprep.subr.mxu0 0.0
    %111 = vmatpush2.msra.mxu0 0.0
    %112 = vmatprep.subr.mxu0 0.0
    %113 = vmatpush2.msra.mxu0 0.0
    %114 = vmatprep.subr.mxu0 0.0
    %115 = vmatpush2.msra.mxu0 0.0
    %116 = vmatprep.subr.mxu0 0.0
    %117 = vmatpush2.msra.mxu0 0.0
    %118 = vmatprep.subr.mxu0 0.0
    %119 = vmatpush2.msra.mxu0 0.0
    %120 = vmatprep.subr.mxu0 0.0
    %121 = vmatpush2.msra.mxu0 0.0
    %122 = vmatprep.subr.mxu0 0.0
    %123 = vmatpush2.msra.mxu0 0.0
    %124 = vmatprep.subr.mxu0 0.0
    %125 = vmatpush2.msra.mxu0 0.0
    %126 = vmatprep.subr.mxu0 0.0
    %127 = vmatpush2.msra.mxu0 0.0
    %128 = vmatprep.subr.mxu0 0.0
    %129 = vmatpush2.msra.mxu0 0.0
    %130 = vmatprep.subr.mxu0 0.0
    %131 = vmatpush2.msra.mxu0 0.0
    %132 = vmatprep.subr.mxu0 0.0
    %133 = vmatpush2.msra.mxu0 0.0
    %134 = vmatprep.subr.mxu0 0.0
    %135 = vmatpush2.msra.mxu0 0.0
    %136 = vmatprep.mubr.f32.mxu0 0.0
    %137 = vmatmul.mubr.f32.gmra.mxu0 %v67
    %v138 = vpop.f32.mrf.mxu0
    %v139 = vadd.f32 %v63, %v138
    %v140 = vpop.f32.mrf.mxu0
    %141 = vmatprep.mubr.f32.mxu0 0.0
    %142 = vmatmul.mubr.f32.gmra.mxu0 %v70
    %v143 = vpop.f32.mrf.mxu0
    %v144 = vadd.f32 %v63, %v143
    %v145 = vpop.f32.mrf.mxu0
    %146 = vdwg.mxu0
    %147 = vmax.xlane.f32.xlu0 %v139
    %v148 = vpop.xlane.xlu0 %147
    %149 = vmax.xlane.f32.xlu0 %v144
    %v150 = vpop.xlane.xlu0 %149
    %v151 = vsub.f32 %v139, %v148
    %v152 = vsub.f32 %v144, %v150
    %v153 = vmul.f32 %v151, 1.442695
    %v154 = vpow.pop %v153
    %v155 = vmul.f32 %v152, 1.442695
    %v156 = vpow.pop %v155
    %157 = vadd.xlane.f32.xlu0 %v154
    %v158 = vpop.xlane.xlu0 %157
    %159 = vadd.xlane.f32.xlu0 %v156
    %v160 = vpop.xlane.xlu0 %159
    %v161 = vlog2.pop %v158
    %v162 = vmul.f32 %v161, 0.6931472
    %v163 = vlog2.pop %v160
    %v164 = vmul.f32 %v163, 0.6931472
    %v165 = vadd.f32 %v162, %v148
    %v166 = vadd.f32 %v164, %v150
    %167 = vst [vmem:[#allocation7] sm:$0xff] %v139
    %168 = vst [vmem:[#allocation7 + $0x8] sm:$0xff] %v144
    %v169 = vsub.f32 %v139, %v165
    %v170 = vsub.f32 %v144, %v166
    %171 = vst [vmem:[#allocation8] sm:$0xff] %v169
    %172 = vst [vmem:[#allocation8 + $0x8] sm:$0xff] %v170
    // Predicated region
    $region22: #{tpu_custom_call.1} parent=1 // pred_check
      _
    $region23: #{tpu_custom_call.1} parent=1 // pred_check_branch
      %174 = sbr.rel (0) target = $region25
    $region24: #{tpu_custom_call.1} parent=1 // pred_region
      %s176 = ssub.s32 256, 256
      %177 = vsyncadd [#allocation4], %s176
      %s178 = sshll.u32 [#allocation7], 4
      %s179 = int_to_ptr.vmem [resolvable:$true] %s178
      %184 = dma.vmem_to_hbm [thread:$0]  %s179, 256, %s3, [#allocation4], 128, 128, 8
    $region25: #{tpu_custom_call.1} parent=1 // pred_fallthru
      _
    // Predicated region
    $region26: #{tpu_custom_call.1} parent=1 // pred_check
      _
    $region27: #{tpu_custom_call.1} parent=1 // pred_check_branch
      %186 = sbr.rel (0) target = $region29
    $region28: #{tpu_custom_call.1} parent=1 // pred_region
      %s188 = ssub.s32 256, 256
      %189 = vsyncadd [#allocation9], %s188
      %s190 = sshll.u32 [#allocation8], 4
      %s191 = int_to_ptr.vmem [resolvable:$true] %s190
      %196 = dma.vmem_to_hbm [thread:$0]  %s191, 256, %s4, [#allocation9], 128, 128, 8
    $region29: #{tpu_custom_call.1} parent=1 // pred_fallthru
      _
    // Predicated region
    $region30: #{tpu_custom_call.1} parent=1 // pred_check
      _
    $region31: #{tpu_custom_call.1} parent=1 // pred_check_branch
      %198 = sbr.rel (0) target = $region33
    $region32: #{tpu_custom_call.1} parent=1 // pred_region
      %199 = dma.done [#allocation4], 256
    $region33: #{tpu_custom_call.1} parent=1 // pred_fallthru
      _
    // Predicated region
    $region34: #{tpu_custom_call.1} parent=1 // pred_check
      _
    $region35: #{tpu_custom_call.1} parent=1 // pred_check_branch
      %201 = sbr.rel (0) target = $region37
    $region36: #{tpu_custom_call.1} parent=1 // pred_region
      %202 = dma.done [#allocation9], 256
    $region37: #{tpu_custom_call.1} parent=1 // pred_fallthru
      _
    %203 = vsyncpa [#allocation3], 1
    %204 = vsyncpa [#allocation6], 1
    %205 = vsyncpa [#allocation4], 1
    %206 = vsyncpa [#allocation9], 1

</llo_original>
